<compile_context>
chip_gen: v6e
topology: v6e:2x2x1
jax: 0.10.0
libtpu: 0.0.40
codegen_flags: <defaults>
</compile_context>

<pallas_src>
import functools

import jax
import jax.numpy as jnp
from jax.experimental import pallas as pl
from jax.experimental.pallas import tpu as pltpu


def _round_up(x: int, m: int) -> int:
    return ((x + m - 1) // m) * m


def _choose_row_tile(m_rows: int, f_pad: int, h_pad: int, out_itemsize: int,
                     budget_bytes: int = 16 * 1024 * 1024,
                     cap: int = 1024) -> int:
    """Pick the row-tile size TM so weight + double-buffered x/out tiles fit
    comfortably in scoped VMEM on every TPU generation (incl. v7x)."""
    weight_bytes = 2 * f_pad * h_pad * 2          # bf16 weight, 2 buffers (worst case)
    per_row = 2 * (f_pad * 2 + h_pad * out_itemsize)  # double-buffered x (bf16) + out
    avail = max(budget_bytes - weight_bytes, per_row * 8)
    tm = min(cap, max(8, (avail // per_row) // 8 * 8))
    if m_rows <= tm:
        return _round_up(m_rows, 8)
    return tm


def _linear_kernel(x_ref, w_ref, b_ref, o_ref):
    # x_ref: (TM, F_pad) bf16   w_ref: (F_pad, H_pad) bf16   b_ref: (1, H_pad) f32
    acc = jnp.dot(x_ref[...], w_ref[...], preferred_element_type=jnp.float32)
    o_ref[...] = (acc + b_ref[...]).astype(o_ref.dtype)


@functools.partial(jax.jit, static_argnames=("compute_dtype",))
def time_distributed_linear(x, weight_t, bias, *, compute_dtype=jnp.bfloat16):
    """TimeDistributed(Linear) forward.

    x:        (B, T, F)
    weight_t: (F, H)   -- PyTorch Linear.weight is (H, F); pass its transpose
    bias:     (H,)
    returns:  (B, T, H) in x.dtype
    """
    B, T, F = x.shape
    H = weight_t.shape[1]
    M = B * T

    out_dtype = x.dtype
    out_itemsize = jnp.dtype(out_dtype).itemsize

    # Lane-dense padding: F and H up to multiples of 128.
    F_pad = _round_up(F, 128)
    H_pad = _round_up(H, 128)

    TM = _choose_row_tile(M, F_pad, H_pad, out_itemsize)
    M_pad = _round_up(M, TM)

    # TimeDistributed glue: collapse leading dims -> (B*T, F); zero-pad.
    x_flat = x.reshape(M, F).astype(compute_dtype)
    x_p = jnp.pad(x_flat, ((0, M_pad - M), (0, F_pad - F)))
    w_p = jnp.pad(weight_t.astype(compute_dtype),
                  ((0, F_pad - F), (0, H_pad - H)))
    b_p = jnp.pad(bias.astype(jnp.float32), (0, H_pad - H)).reshape(1, H_pad)

    grid = (M_pad // TM,)

    cost = pl.CostEstimate(
        flops=2 * M_pad * F_pad * H_pad,
        transcendentals=0,
        bytes_accessed=(M_pad * F_pad + F_pad * H_pad) * 2
        + M_pad * H_pad * out_itemsize,
    )

    out_p = pl.pallas_call(
        _linear_kernel,
        out_shape=jax.ShapeDtypeStruct((M_pad, H_pad), out_dtype),
        grid=grid,
        in_specs=[
            # x: one (TM, F_pad) row tile per grid step (pipelined).
            pl.BlockSpec((TM, F_pad), lambda i: (i, 0)),
            # weight / bias: same block every step -> stays VMEM-resident.
            pl.BlockSpec((F_pad, H_pad), lambda i: (0, 0)),
            pl.BlockSpec((1, H_pad), lambda i: (0, 0)),
        ],
        out_specs=pl.BlockSpec((TM, H_pad), lambda i: (i, 0)),
        compiler_params=pltpu.CompilerParams(
            dimension_semantics=("parallel",),
            vmem_limit_bytes=32 << 20,
        ),
        cost_estimate=cost,
    )(x_p, w_p, b_p)

    # TimeDistributed glue: drop padding, restore (B, -1, H).
    return out_p[:M, :H].reshape(B, T, H)


if __name__ == "__main__":
    # Small shapes implied by the forward: (batch, seq, features).
    B, T, F, H = 2, 8, 32, 64

    key = jax.random.PRNGKey(0)
    kx, kw, kb = jax.random.split(key, 3)

    x = jax.random.normal(kx, (B, T, F), dtype=jnp.float32)

    # Deterministic synthetic parameters for the wrapped Linear(F -> H).
    # (PyTorch stores weight as (H, F); we keep the transposed (F, H) layout.)
    bound = 1.0 / jnp.sqrt(jnp.float32(F))
    weight_t = jax.random.uniform(kw, (F, H), dtype=jnp.float32,
                                  minval=-bound, maxval=bound)
    bias = jax.random.uniform(kb, (H,), dtype=jnp.float32,
                              minval=-bound, maxval=bound)

    out = time_distributed_linear(x, weight_t, bias)
    out = jax.block_until_ready(out)

    # Reference check against plain JAX (same semantics as the PyTorch module).
    # Tolerance relaxed because the kernel computes the matmul in bf16
    # (f32 accumulation).
    ref = (x.reshape(B * T, F) @ weight_t + bias).reshape(B, T, H)
    assert out.shape == (B, T, H), out.shape
    assert jnp.allclose(out, ref, atol=2e-2, rtol=2e-2), (
        float(jnp.max(jnp.abs(out - ref))))

    print("KERNEL_OK")
</pallas_src>

<mosaic_0001>
module attributes {stable_mosaic.version = 11 : i64} {
  func.func @_linear_kernel(%arg0: i32, %arg1: memref<16x128xbf16, #tpu.memory_space<vmem>>, %arg2: memref<128x128xbf16, #tpu.memory_space<vmem>>, %arg3: memref<1x128xf32, #tpu.memory_space<vmem>>, %arg4: memref<16x128xf32, #tpu.memory_space<vmem>>) attributes {dimension_semantics = [#tpu.dimension_semantics<parallel>], iteration_bounds = array<i64: 1>, scalar_prefetch = 0 : i64, scratch_operands = 0 : i64, tpu.core_type = #tpu.core_type<tc>, window_params = [{transform_indices = @transform_0, window_bounds = array<i64: 16, 128>}, {pipeline_mode = #tpu.pipeline_mode<synchronous>, transform_indices = @transform_1, window_bounds = array<i64: 128, 128>}, {pipeline_mode = #tpu.pipeline_mode<synchronous>, transform_indices = @transform_2, window_bounds = array<i64: 1, 128>}, {transform_indices = @transform_3, window_bounds = array<i64: 16, 128>}]} {
    %c0 = arith.constant 0 : index
    %c0_0 = arith.constant 0 : index
    %0 = vector.load %arg1[%c0, %c0_0] : memref<16x128xbf16, #tpu.memory_space<vmem>>, vector<16x128xbf16>
    %c0_1 = arith.constant 0 : index
    %c0_2 = arith.constant 0 : index
    %1 = vector.load %arg2[%c0_1, %c0_2] : memref<128x128xbf16, #tpu.memory_space<vmem>>, vector<128x128xbf16>
    %cst = arith.constant dense<0.000000e+00> : vector<16x128xf32>
    %2 = tpu.matmul %0, %1, %cst {dimension_numbers = #tpu.dot_dimension_numbers<[1], [0], [0], [1], [0, 0, 1, 1], [], []>} : vector<16x128xbf16>, vector<128x128xbf16>, vector<16x128xf32> -> vector<16x128xf32>
    %c0_3 = arith.constant 0 : index
    %c0_4 = arith.constant 0 : index
    %3 = vector.load %arg3[%c0_3, %c0_4] : memref<1x128xf32, #tpu.memory_space<vmem>>, vector<1x128xf32>
    %4 = vector.broadcast %3 : vector<1x128xf32> to vector<16x128xf32>
    %5 = arith.addf %2, %4 : vector<16x128xf32>
    %c0_5 = arith.constant 0 : index
    %c0_6 = arith.constant 0 : index
    %6 = vector.load %arg4[%c0_5, %c0_6] : memref<16x128xf32, #tpu.memory_space<vmem>>, vector<16x128xf32>
    tpu.vector_store %arg4[%c0_5, %c0_6], %5 {strides = array<i32>} : memref<16x128xf32, #tpu.memory_space<vmem>>, vector<16x128xf32>,
    return
  }
  func.func @transform_0(%arg0: i32) -> (i32, i32) {
    %c0_i32 = arith.constant 0 : i32
    %c0_i32_0 = arith.constant 0 : i32
    return %arg0, %c0_i32 : i32, i32
  }
  func.func @transform_1(%arg0: i32) -> (i32, i32) {
    %c0_i32 = arith.constant 0 : i32
    %c0_i32_0 = arith.constant 0 : i32
    %c0_i32_1 = arith.constant 0 : i32
    return %c0_i32, %c0_i32_0 : i32, i32
  }
  func.func @transform_2(%arg0: i32) -> (i32, i32) {
    %c0_i32 = arith.constant 0 : i32
    %c0_i32_0 = arith.constant 0 : i32
    %c0_i32_1 = arith.constant 0 : i32
    return %c0_i32, %c0_i32_0 : i32, i32
  }
  func.func @transform_3(%arg0: i32) -> (i32, i32) {
    %c0_i32 = arith.constant 0 : i32
    %c0_i32_0 = arith.constant 0 : i32
    return %arg0, %c0_i32 : i32, i32
  }
}

</mosaic_0001>

<llo_original>
// kernel: time_distributed_linear.1
$region0: #{time_distributed_linear.1}
  #allocation0 [shape = 'u32[]', space=smem, size = 0x4, offset = 0x4, fixed_abs, tag = 'smem constant byte address 0x4 - core index']
  #allocation1 [shape = 'u32[144,128]{1,0:T(1,128)}', space=vmem, size = 0x12000, scoped, tag = 'internal scratch']
  %s0 = inlined_call_operand.vmem [shape: bf16[16,128], index: 0, kind: input, shape index: {}]
  %s1 = inlined_call_operand.vmem [shape: bf16[128,128], index: 1, kind: input, shape index: {}]
  %s2 = inlined_call_operand.vmem [shape: f32[1,128], index: 2, kind: input, shape index: {}]
  %s3 = inlined_call_operand.vmem [shape: f32[16,128], index: 3, kind: output, shape index: {}]
  %s4 = sld [smem:[#allocation0]]
  $region22: #{time_distributed_linear.1} parent=0
    _
  %s6 = ssub.s32 1, %s4
  %s7 = scalar_select 0, %s6, %s4
  // Predicated region
  $region2: #{time_distributed_linear.1} parent=0 // pred_check
    _
  $region3: #{time_distributed_linear.1} parent=0 // pred_check_branch
    %9 = sbr.rel (0) target = $region5
  $region4: #{time_distributed_linear.1} parent=0 // pred_region
    _
  $region5: #{time_distributed_linear.1} parent=0 // pred_fallthru
    _
  // Predicated region
  $region6: #{time_distributed_linear.1} parent=0 // pred_check
    _
  $region7: #{time_distributed_linear.1} parent=0 // pred_check_branch
    %11 = sbr.rel (0) target = $region9
  $region8: #{time_distributed_linear.1} parent=0 // pred_region
    _
  $region9: #{time_distributed_linear.1} parent=0 // pred_fallthru
    _
  // Predicated region
  $region10: #{time_distributed_linear.1} parent=0 // pred_check
    _
  $region11: #{time_distributed_linear.1} parent=0 // pred_check_branch
    %13 = sbr.rel (0) target = $region13
  $region12: #{time_distributed_linear.1} parent=0 // pred_region
    _
  $region13: #{time_distributed_linear.1} parent=0 // pred_fallthru
    _
  %v15 = vld [vmem:[%s0] sm:$0xf]
  %v16 = vld [vmem:[%s0 + $0x4] sm:$0xf]
  %v17 = vld [vmem:[%s1] sm:$0xf]
  %v18 = vld [vmem:[%s1 + $0x4] sm:$0xf]
  %v19 = vld [vmem:[%s1 + $0x8] sm:$0xf]
  %v20 = vld [vmem:[%s1 + $0xc] sm:$0xf]
  %v21 = vld [vmem:[%s1 + $0x10] sm:$0xf]
  %v22 = vld [vmem:[%s1 + $0x14] sm:$0xf]
  %v23 = vld [vmem:[%s1 + $0x18] sm:$0xf]
  %v24 = vld [vmem:[%s1 + $0x1c] sm:$0xf]
  %v25 = vld [vmem:[%s1 + $0x20] sm:$0xf]
  %v26 = vld [vmem:[%s1 + $0x24] sm:$0xf]
  %v27 = vld [vmem:[%s1 + $0x28] sm:$0xf]
  %v28 = vld [vmem:[%s1 + $0x2c] sm:$0xf]
  %v29 = vld [vmem:[%s1 + $0x30] sm:$0xf]
  %v30 = vld [vmem:[%s1 + $0x34] sm:$0xf]
  %v31 = vld [vmem:[%s1 + $0x38] sm:$0xf]
  %v32 = vld [vmem:[%s1 + $0x3c] sm:$0xf]
  %v33 = vld [vmem:[%s2] sm:$0x1]
  %v35 = vlaneseq
  %v36 = vshrl.u32 %v35, 7
  %v37 = vsub.s32 0, %v36
  %v38 = vrot.slane %v33, %v37
  %v42 = vunpack.c.l.b16 %v15
  %v43 = vunpack.c.l.b16 %v16
  %v44 = vpack.c.b16 %v43, %v42
  %v62 = vunpack.c.l.b16 %v17
  %v63 = vunpack.c.l.b16 %v18
  %v64 = vunpack.c.l.b16 %v19
  %v65 = vunpack.c.l.b16 %v20
  %v66 = vunpack.c.l.b16 %v21
  %v67 = vunpack.c.l.b16 %v22
  %v68 = vunpack.c.l.b16 %v23
  %v69 = vunpack.c.l.b16 %v24
  %v70 = vunpack.c.l.b16 %v25
  %v71 = vunpack.c.l.b16 %v26
  %v72 = vunpack.c.l.b16 %v27
  %v73 = vunpack.c.l.b16 %v28
  %v74 = vunpack.c.l.b16 %v29
  %v75 = vunpack.c.l.b16 %v30
  %v76 = vunpack.c.l.b16 %v31
  %v77 = vunpack.c.l.b16 %v32
  %v78 = vpack.c.b16 %v63, %v62
  %v79 = vpack.c.b16 %v65, %v64
  %v80 = vpack.c.b16 %v67, %v66
  %v81 = vpack.c.b16 %v69, %v68
  %v82 = vpack.c.b16 %v71, %v70
  %v83 = vpack.c.b16 %v73, %v72
  %v84 = vpack.c.b16 %v75, %v74
  %v85 = vpack.c.b16 %v77, %v76
  %94 = vmatprep.subr.bf16.mxu0 0
  %95 = vmatpush1.bf16.msra.mxu0 %v85
  %96 = vmatprep.subr.bf16.mxu0 0
  %97 = vmatpush1.bf16.msra.mxu0 %v84
  %98 = vmatprep.subr.bf16.mxu0 0
  %99 = vmatpush1.bf16.msra.mxu0 %v83
  %100 = vmatprep.subr.bf16.mxu0 0
  %101 = vmatpush1.bf16.msra.mxu0 %v82
  %102 = vmatprep.subr.bf16.mxu0 0
  %103 = vmatpush1.bf16.msra.mxu0 %v81
  %104 = vmatprep.subr.bf16.mxu0 0
  %105 = vmatpush1.bf16.msra.mxu0 %v80
  %106 = vmatprep.subr.bf16.mxu0 0
  %107 = vmatpush1.bf16.msra.mxu0 %v79
  %108 = vmatprep.subr.bf16.mxu0 0
  %109 = vmatpush1.bf16.msra.mxu0 %v78
  %110 = vmatprep.subr.bf16.mxu0 0
  %111 = vmatpush2.bf16.msra.mxu0 0
  %112 = vmatprep.subr.bf16.mxu0 0
  %113 = vmatpush2.bf16.msra.mxu0 0
  %114 = vmatprep.subr.bf16.mxu0 0
  %115 = vmatpush2.bf16.msra.mxu0 0
  %116 = vmatprep.subr.bf16.mxu0 0
  %117 = vmatpush2.bf16.msra.mxu0 0
  %118 = vmatprep.subr.bf16.mxu0 0
  %119 = vmatpush2.bf16.msra.mxu0 0
  %120 = vmatprep.subr.bf16.mxu0 0
  %121 = vmatpush2.bf16.msra.mxu0 0
  %122 = vmatprep.subr.bf16.mxu0 0
  %123 = vmatpush2.bf16.msra.mxu0 0
  %124 = vmatprep.subr.bf16.mxu0 0
  %125 = vmatpush2.bf16.msra.mxu0 0
  %126 = vmatprep.mubr.bf16.mxu0 0
  %127 = vmatmul.mubr.bf16.gmra.mxu0 %v44
  %v128 = vpop.f32.mrf.mxu0
  %v129 = vadd.f32 %v38, %v128
  %v130 = vpop.f32.mrf.mxu0
  %v131 = vpop.f32.mrf.mxu0
  %v132 = vadd.f32 %v38, %v131
  %v133 = vpop.f32.mrf.mxu0
  %134 = vdwg.mxu0
  %135 = vst [vmem:[%s3] sm:$0xff] %v129
  %136 = vst [vmem:[%s3 + $0x8] sm:$0xff] %v132
  // Predicated region
  $region14: #{time_distributed_linear.1} parent=0 // pred_check
    _
  $region15: #{time_distributed_linear.1} parent=0 // pred_check_branch
    %138 = sbr.rel (0) target = $region17
  $region16: #{time_distributed_linear.1} parent=0 // pred_region
    _
  $region17: #{time_distributed_linear.1} parent=0 // pred_fallthru
    _
  // Predicated region
  $region18: #{time_distributed_linear.1} parent=0 // pred_check
    _
  $region19: #{time_distributed_linear.1} parent=0 // pred_check_branch
    %140 = sbr.rel (0) target = $region21
  $region20: #{time_distributed_linear.1} parent=0 // pred_region
    _
  $region21: #{time_distributed_linear.1} parent=0 // pred_fallthru
    _

</llo_original>
